<compile_context>
chip_gen: v6e
topology: v6e:2x2x1
jax: 0.10.0
libtpu: 0.0.40
codegen_flags: <defaults>
</compile_context>

<pallas_src>
import functools

import jax
import jax.numpy as jnp
from jax import lax
from jax.experimental import pallas as pl
from jax.experimental.pallas import tpu as pltpu

NUM_CLASSES = 8          # num_classes (incl. background)
OVERLAP_THRESH = 0.5     # overlap_thresh
NEGPOS_RATIO = 3         # neg_pos
VARIANCE = (0.1, 0.2)    # cfg['variance']

_BISECT_ITERS = 20       # f32 bisection for the k-th largest conf loss
_LANES = 128
_PAD_TO = 1024           # 8 sublanes x 128 lanes -> fully dense vregs


# --------------------------- matching glue (plain JAX) ---------------------------
def point_form(priors):
    return jnp.concatenate([priors[:, :2] - priors[:, 2:] / 2.0,
                            priors[:, :2] + priors[:, 2:] / 2.0], axis=1)


def jaccard(box_a, box_b):
    max_xy = jnp.minimum(box_a[:, None, 2:], box_b[None, :, 2:])
    min_xy = jnp.maximum(box_a[:, None, :2], box_b[None, :, :2])
    wh = jnp.maximum(max_xy - min_xy, 0.0)
    inter = wh[..., 0] * wh[..., 1]
    area_a = ((box_a[:, 2] - box_a[:, 0]) * (box_a[:, 3] - box_a[:, 1]))[:, None]
    area_b = ((box_b[:, 2] - box_b[:, 0]) * (box_b[:, 3] - box_b[:, 1]))[None, :]
    return inter / (area_a + area_b - inter)


def encode(matched, priors, variances):
    g_cxcy = (matched[:, :2] + matched[:, 2:]) / 2.0 - priors[:, :2]
    g_cxcy = g_cxcy / (variances[0] * priors[:, 2:])
    g_wh = (matched[:, 2:] - matched[:, :2]) / priors[:, 2:]
    g_wh = jnp.log(g_wh) / variances[1]
    return jnp.concatenate([g_cxcy, g_wh], axis=1)


def match_single(truths, labels, priors, threshold, variances):
    """Port of ssd.pytorch box_utils.match for one image (fixed num GT boxes)."""
    overlaps = jaccard(truths, point_form(priors))        # (O, P)
    best_prior_idx = jnp.argmax(overlaps, axis=1)         # (O,)
    best_truth_overlap = jnp.max(overlaps, axis=0)        # (P,)
    best_truth_idx = jnp.argmax(overlaps, axis=0)         # (P,)
    best_truth_overlap = best_truth_overlap.at[best_prior_idx].set(2.0)
    for j in range(truths.shape[0]):                      # each GT keeps its best prior
        best_truth_idx = best_truth_idx.at[best_prior_idx[j]].set(j)
    matches = truths[best_truth_idx]                      # (P, 4)
    conf = labels[best_truth_idx] + 1                     # (P,)
    conf = jnp.where(best_truth_overlap < threshold, 0, conf)
    loc = encode(matches, priors, variances)              # (P, 4)
    return loc.astype(jnp.float32), conf.astype(jnp.int32)


# --------------------------------- Pallas kernel ---------------------------------
def _sum_pr(x):
    """Sum over the two trailing prior dims (Ps, 128) -> (..., 1, 1)."""
    return jnp.sum(jnp.sum(x, axis=3, keepdims=True), axis=2, keepdims=True)


def _max_pr(x):
    return jnp.max(jnp.max(x, axis=3, keepdims=True), axis=2, keepdims=True)


def _multibox_loss_kernel(loc_p_ref, loc_t_ref, conf_ref, gath_ref, labels_ref,
                          out_ref, *, num_valid):
    loc_p = loc_p_ref[...]        # (Bt, 4, Ps, 128) f32
    loc_t = loc_t_ref[...]        # (Bt, 4, Ps, 128) f32
    conf = conf_ref[...]          # (Bt, C, Ps, 128) f32
    gathered = gath_ref[...]      # (Bt, 1, Ps, 128) f32  (conf at the target label)
    labels = labels_ref[...]      # (Bt, 1, Ps, 128) i32  (0 for background & padding)
    Bt, C, Ps, L = conf.shape

    # Mask for real (non-padded) priors — computed once, cheap.
    sub = lax.broadcasted_iota(jnp.int32, (Bt, 1, Ps, L), 2)
    lane = lax.broadcasted_iota(jnp.int32, (Bt, 1, Ps, L), 3)
    valid = (sub * L + lane) < num_valid

    pos = labels > 0                                        # (Bt,1,Ps,128)
    posf = pos.astype(jnp.float32)
    num_pos = _sum_pr(posf)                                 # (Bt,1,1,1)

    # ---- localization loss: smooth-L1 over positive priors, per image ----
    diff = loc_p - loc_t
    ad = jnp.abs(diff)
    sl1 = jnp.where(ad < 1.0, 0.5 * diff * diff, ad - 0.5)  # (Bt,4,Ps,128)
    loss_l = _sum_pr(jnp.sum(sl1, axis=1, keepdims=True) * posf)

    # ---- per-prior confidence loss: log_sum_exp(conf) - conf[label] ----
    # (reduction over C is a leading axis -> plain VALU adds, no cross-lane work)
    row_max = jnp.max(conf, axis=1, keepdims=True)          # (Bt,1,Ps,128)
    lse = jnp.log(jnp.sum(jnp.exp(conf - row_max), axis=1, keepdims=True)) + row_max
    lc_raw = lse - gathered                                 # (Bt,1,Ps,128), >= 0 on real lanes

    # ---- hard-negative mining: top-num_neg sum via threshold bisection ----
    # (O(P) per iteration; the sum of the selected negatives is exact thanks to
    #  the thr*(k-cnt) tie/remainder correction)
    lc_neg = jnp.where(jnp.logical_or(pos, jnp.logical_not(valid)), 0.0, lc_raw)
    k = jnp.minimum(float(NEGPOS_RATIO) * num_pos, float(num_valid - 1))

    hi0 = _max_pr(lc_neg)                                   # (Bt,1,1,1)
    lo0 = jnp.zeros_like(hi0)

    def bisect2(_, carry):
        lo, hi = carry
        for _u in range(2):                                 # manual 2x unroll
            mid = 0.5 * (lo + hi)
            cnt = _sum_pr(jnp.where(lc_neg > mid, 1.0, 0.0))
            take_hi = cnt >= k
            lo = jnp.where(take_hi, mid, lo)
            hi = jnp.where(take_hi, hi, mid)
        return lo, hi

    lo, hi = lax.fori_loop(0, _BISECT_ITERS // 2, bisect2, (lo0, hi0))
    thr = 0.5 * (lo + hi)                                   # ~ k-th largest value
    above = lc_neg > thr
    cnt = _sum_pr(above.astype(jnp.float32))
    neg_sum = _sum_pr(jnp.where(above, lc_neg, 0.0)) + thr * (k - cnt)
    pos_sum = _sum_pr(lc_raw * posf)
    loss_c = pos_sum + neg_sum                              # (Bt,1,1,1)

    # ---- pack per-image partials into a lane-dense (Bt,1,1,128) output slab ----
    out_lane = lax.broadcasted_iota(jnp.int32, out_ref.shape, 3)
    out_ref[...] = jnp.where(out_lane == 0, loss_l,
                   jnp.where(out_lane == 1, loss_c,
                   jnp.where(out_lane == 2, num_pos, 0.0)))


# ------------------------------------ wrapper ------------------------------------
def _round_up(x, m):
    return ((x + m - 1) // m) * m


def _pick_batch_tile(B, Pp, C, vmem_budget=8 * 1024 * 1024):
    """Largest divisor of B whose per-block footprint (double-buffered inputs +
    rough in-kernel intermediates) fits a conservative budget, staying well under
    the 16 MiB v5e default scoped VMEM and v7x's 64 MiB physical VMEM.  Also keep
    >= 2 grid steps when B >= 2 so ("parallel",) can shard across both v7x TCs."""
    inputs = (C + 10) * Pp * 4            # conf + 2*loc + labels + gathered (f32/i32)
    interm = (C + 8) * Pp * 4             # exp(conf), sl1, lc_* rows, masks, ...
    per_image = 2 * inputs + interm       # 2x for BlockSpec double-buffering
    cap = max(1, vmem_budget // per_image)
    max_bt = min(cap, B // 2) if B >= 2 else 1
    max_bt = max(1, max_bt)
    bt = 1
    for d in range(1, B + 1):
        if B % d == 0 and d <= max_bt:
            bt = d
    return bt


@jax.jit
def multibox_loss(loc_data, conf_data, priors, target_boxes, target_labels):
    B, P, _ = loc_data.shape
    C = conf_data.shape[-1]

    loc_t, conf_t = jax.vmap(
        lambda t, l: match_single(t, l, priors, OVERLAP_THRESH, VARIANCE)
    )(target_boxes, target_labels)

    # conf gathered at the target label (B, P): precomputed so the kernel avoids
    # an in-kernel one-hot build + cross-axis reduce per grid step.
    gathered = jnp.take_along_axis(conf_data, conf_t[..., None], axis=-1)[..., 0]

    # Sublane + lane dense layout: prior axis -> (Ps, 128) trailing dims, padded.
    Pp = _round_up(P, _PAD_TO)
    Ps = Pp // _LANES

    def dense(x, dtype):                  # (B, P) or (B, P, X) -> (B, X, Ps, 128)
        if x.ndim == 2:
            x = x[..., None]
        x = jnp.transpose(x, (0, 2, 1)).astype(dtype)        # (B, X, P)
        x = jnp.pad(x, ((0, 0), (0, 0), (0, Pp - P)))        # pad priors with 0
        return x.reshape(B, x.shape[1], Ps, _LANES)

    loc_p_l = dense(loc_data, jnp.float32)    # (B, 4, Ps, 128)
    loc_t_l = dense(loc_t, jnp.float32)       # (B, 4, Ps, 128)
    conf_l = dense(conf_data, jnp.float32)    # (B, C, Ps, 128)
    gath_l = dense(gathered, jnp.float32)     # (B, 1, Ps, 128)
    labels_l = dense(conf_t, jnp.int32)       # (B, 1, Ps, 128), padded lanes = 0

    Bt = _pick_batch_tile(B, Pp, C)
    nb = B // Bt

    cost = pl.CostEstimate(
        flops=B * Pp * (6 * C + 40 + 3 * _BISECT_ITERS),
        transcendentals=B * Pp * (C + 1),
        bytes_accessed=4 * (loc_p_l.size + loc_t_l.size + conf_l.size
                            + gath_l.size + labels_l.size + B * _LANES),
    )

    grid_spec = pltpu.PrefetchScalarGridSpec(
        num_scalar_prefetch=0,
        grid=(nb,),
        in_specs=[pl.BlockSpec((Bt, 4, Ps, _LANES), lambda b: (b, 0, 0, 0)),
                  pl.BlockSpec((Bt, 4, Ps, _LANES), lambda b: (b, 0, 0, 0)),
                  pl.BlockSpec((Bt, C, Ps, _LANES), lambda b: (b, 0, 0, 0)),
                  pl.BlockSpec((Bt, 1, Ps, _LANES), lambda b: (b, 0, 0, 0)),
                  pl.BlockSpec((Bt, 1, Ps, _LANES), lambda b: (b, 0, 0, 0))],
        out_specs=pl.BlockSpec((Bt, 1, 1, _LANES), lambda b: (b, 0, 0, 0)),
    )
    partials = pl.pallas_call(
        functools.partial(_multibox_loss_kernel, num_valid=P),
        out_shape=jax.ShapeDtypeStruct((B, 1, 1, _LANES), jnp.float32),
        grid_spec=grid_spec,
        compiler_params=pltpu.CompilerParams(dimension_semantics=("parallel",)),
        cost_estimate=cost,
    )(loc_p_l, loc_t_l, conf_l, gath_l, labels_l)

    per_image = partials[:, 0, 0, :3]       # (B, 3): [loss_l, loss_c, num_pos]
    totals = jnp.sum(per_image, axis=0)
    N = totals[2]                           # NOTE: N == 0 -> inf (matches upstream)
    return totals[0] / N, totals[1] / N


# -------------------------- pure-JAX reference (check) ---------------------------
def multibox_loss_reference(loc_data, conf_data, priors, target_boxes, target_labels):
    B, P, _ = loc_data.shape
    loc_t, conf_t = jax.vmap(
        lambda t, l: match_single(t, l, priors, OVERLAP_THRESH, VARIANCE)
    )(target_boxes, target_labels)
    pos = conf_t > 0
    diff = loc_data - loc_t
    ad = jnp.abs(diff)
    sl1 = jnp.where(ad < 1.0, 0.5 * diff * diff, ad - 0.5)
    loss_l = jnp.sum(sl1 * pos[..., None])
    lse = jax.scipy.special.logsumexp(conf_data, axis=-1)
    gathered = jnp.take_along_axis(conf_data, conf_t[..., None], axis=-1)[..., 0]
    lc = lse - gathered
    lc_m = jnp.where(pos, 0.0, lc)
    loss_idx = jnp.argsort(-lc_m, axis=1)            # descending, stable
    idx_rank = jnp.argsort(loss_idx, axis=1)
    num_pos = jnp.sum(pos, axis=1, keepdims=True)
    num_neg = jnp.minimum(NEGPOS_RATIO * num_pos, P - 1)
    neg = idx_rank < num_neg
    sel = pos | neg
    loss_c = jnp.sum(jnp.where(sel, lc, 0.0))
    N = jnp.sum(num_pos).astype(jnp.float32)
    return loss_l / N, loss_c / N


if __name__ == "__main__":
    key = jax.random.PRNGKey(0)
    # Small shapes; P deliberately NOT a multiple of 128 to exercise padding/masking.
    B, P, C, num_obj = 2, 200, NUM_CLASSES, 3
    k1, k2, k3, k4, k5, k6 = jax.random.split(key, 6)

    loc_data = 0.1 * jax.random.normal(k1, (B, P, 4), jnp.float32)
    conf_data = jax.random.normal(k2, (B, P, C), jnp.float32)

    cxcy = jax.random.uniform(k3, (P, 2), minval=0.1, maxval=0.9)
    wh = jax.random.uniform(k4, (P, 2), minval=0.1, maxval=0.4)
    priors = jnp.concatenate([cxcy, wh], axis=1).astype(jnp.float32)

    pts = jax.random.uniform(k5, (B, num_obj, 2, 2), minval=0.05, maxval=0.9)
    mins = jnp.min(pts, axis=2)
    maxs = jnp.max(pts, axis=2) + 0.05                 # guarantee positive box extent
    target_boxes = jnp.concatenate([mins, maxs], axis=-1).astype(jnp.float32)
    target_labels = jax.random.randint(k6, (B, num_obj), 0, C - 1)

    loss_l, loss_c = multibox_loss(loc_data, conf_data, priors,
                                   target_boxes, target_labels)
    jax.block_until_ready((loss_l, loss_c))

    ref_l, ref_c = multibox_loss_reference(loc_data, conf_data, priors,
                                           target_boxes, target_labels)
    assert jnp.allclose(loss_l, ref_l, rtol=1e-3, atol=1e-3), (loss_l, ref_l)
    assert jnp.allclose(loss_c, ref_c, rtol=1e-3, atol=1e-3), (loss_c, ref_c)
    print("KERNEL_OK")
</pallas_src>

<mosaic_0001>
module attributes {stable_mosaic.version = 11 : i64} {
  func.func @_multibox_loss_kernel(%arg0: i32, %arg1: memref<1x4x8x128xf32, #tpu.memory_space<vmem>>, %arg2: memref<1x4x8x128xf32, #tpu.memory_space<vmem>>, %arg3: memref<1x8x8x128xf32, #tpu.memory_space<vmem>>, %arg4: memref<1x1x8x128xf32, #tpu.memory_space<vmem>>, %arg5: memref<1x1x8x128xi32, #tpu.memory_space<vmem>>, %arg6: memref<1x1x1x128xf32, #tpu.memory_space<vmem>>) attributes {dimension_semantics = [#tpu.dimension_semantics<parallel>], iteration_bounds = array<i64: 2>, scalar_prefetch = 0 : i64, scratch_operands = 0 : i64, tpu.core_type = #tpu.core_type<tc>, window_params = [{transform_indices = @transform_0, window_bounds = array<i64: 1, 4, 8, 128>}, {transform_indices = @transform_1, window_bounds = array<i64: 1, 4, 8, 128>}, {transform_indices = @transform_2, window_bounds = array<i64: 1, 8, 8, 128>}, {transform_indices = @transform_3, window_bounds = array<i64: 1, 1, 8, 128>}, {transform_indices = @transform_4, window_bounds = array<i64: 1, 1, 8, 128>}, {transform_indices = @transform_5, window_bounds = array<i64: 1, 1, 1, 128>}]} {
    %c0 = arith.constant 0 : index
    %c0_0 = arith.constant 0 : index
    %c0_1 = arith.constant 0 : index
    %c0_2 = arith.constant 0 : index
    %0 = vector.load %arg1[%c0, %c0_0, %c0_1, %c0_2] : memref<1x4x8x128xf32, #tpu.memory_space<vmem>>, vector<1x4x8x128xf32>
    %c0_3 = arith.constant 0 : index
    %c0_4 = arith.constant 0 : index
    %c0_5 = arith.constant 0 : index
    %c0_6 = arith.constant 0 : index
    %1 = vector.load %arg2[%c0_3, %c0_4, %c0_5, %c0_6] : memref<1x4x8x128xf32, #tpu.memory_space<vmem>>, vector<1x4x8x128xf32>
    %c0_7 = arith.constant 0 : index
    %c0_8 = arith.constant 0 : index
    %c0_9 = arith.constant 0 : index
    %c0_10 = arith.constant 0 : index
    %2 = vector.load %arg3[%c0_7, %c0_8, %c0_9, %c0_10] : memref<1x8x8x128xf32, #tpu.memory_space<vmem>>, vector<1x8x8x128xf32>
    %c0_11 = arith.constant 0 : index
    %c0_12 = arith.constant 0 : index
    %c0_13 = arith.constant 0 : index
    %c0_14 = arith.constant 0 : index
    %3 = vector.load %arg4[%c0_11, %c0_12, %c0_13, %c0_14] : memref<1x1x8x128xf32, #tpu.memory_space<vmem>>, vector<1x1x8x128xf32>
    %c0_15 = arith.constant 0 : index
    %c0_16 = arith.constant 0 : index
    %c0_17 = arith.constant 0 : index
    %c0_18 = arith.constant 0 : index
    %4 = vector.load %arg5[%c0_15, %c0_16, %c0_17, %c0_18] : memref<1x1x8x128xi32, #tpu.memory_space<vmem>>, vector<1x1x8x128xi32>
    %5 = tpu.iota {dimensions = array<i32: 2>} : vector<1x1x8x128xi32>
    %6 = tpu.iota {dimensions = array<i32: 3>} : vector<1x1x8x128xi32>
    %c128_i32 = arith.constant 128 : i32
    %7 = vector.broadcast %c128_i32 : i32 to vector<1x1x8x128xi32>
    %8 = arith.muli %5, %7 : vector<1x1x8x128xi32>
    %9 = arith.addi %8, %6 : vector<1x1x8x128xi32>
    %c200_i32 = arith.constant 200 : i32
    %10 = vector.broadcast %c200_i32 : i32 to vector<1x1x8x128xi32>
    %11 = arith.cmpi slt, %9, %10 : vector<1x1x8x128xi32>
    %c0_i32 = arith.constant 0 : i32
    %12 = vector.broadcast %c0_i32 : i32 to vector<1x1x8x128xi32>
    %13 = arith.cmpi sgt, %4, %12 : vector<1x1x8x128xi32>
    %14 = arith.extui %13 : vector<1x1x8x128xi1> to vector<1x1x8x128xi32>
    %15 = arith.sitofp %14 : vector<1x1x8x128xi32> to vector<1x1x8x128xf32>
    %cst = arith.constant dense<0.000000e+00> : vector<1x1x8xf32>
    %16 = vector.multi_reduction <add>, %15, %cst [3] : vector<1x1x8x128xf32> to vector<1x1x8xf32>
    %17 = vector.shape_cast %16 : vector<1x1x8xf32> to vector<1x1x8x1xf32>
    %cst_19 = arith.constant dense<0.000000e+00> : vector<1x1x1xf32>
    %18 = vector.multi_reduction <add>, %17, %cst_19 [2] : vector<1x1x8x1xf32> to vector<1x1x1xf32>
    %19 = vector.shape_cast %18 : vector<1x1x1xf32> to vector<1x1x1x1xf32>
    %20 = arith.subf %0, %1 : vector<1x4x8x128xf32>
    %21 = math.absf %20 : vector<1x4x8x128xf32>
    %cst_20 = arith.constant 1.000000e+00 : f32
    %22 = vector.broadcast %cst_20 : f32 to vector<1x4x8x128xf32>
    %23 = arith.cmpf olt, %21, %22 : vector<1x4x8x128xf32>
    %cst_21 = arith.constant 5.000000e-01 : f32
    %24 = vector.broadcast %cst_21 : f32 to vector<1x4x8x128xf32>
    %25 = arith.mulf %24, %20 : vector<1x4x8x128xf32>
    %26 = arith.mulf %25, %20 : vector<1x4x8x128xf32>
    %cst_22 = arith.constant 5.000000e-01 : f32
    %27 = vector.broadcast %cst_22 : f32 to vector<1x4x8x128xf32>
    %28 = arith.subf %21, %27 : vector<1x4x8x128xf32>
    %29 = arith.select %23, %26, %28 : vector<1x4x8x128xi1>, vector<1x4x8x128xf32>
    %cst_23 = arith.constant dense<0.000000e+00> : vector<1x8x128xf32>
    %30 = vector.multi_reduction <add>, %29, %cst_23 [1] : vector<1x4x8x128xf32> to vector<1x8x128xf32>
    %31 = vector.shape_cast %30 : vector<1x8x128xf32> to vector<1x1x8x128xf32>
    %32 = arith.mulf %31, %15 : vector<1x1x8x128xf32>
    %cst_24 = arith.constant dense<0.000000e+00> : vector<1x1x8xf32>
    %33 = vector.multi_reduction <add>, %32, %cst_24 [3] : vector<1x1x8x128xf32> to vector<1x1x8xf32>
    %34 = vector.shape_cast %33 : vector<1x1x8xf32> to vector<1x1x8x1xf32>
    %cst_25 = arith.constant dense<0.000000e+00> : vector<1x1x1xf32>
    %35 = vector.multi_reduction <add>, %34, %cst_25 [2] : vector<1x1x8x1xf32> to vector<1x1x1xf32>
    %36 = vector.shape_cast %35 : vector<1x1x1xf32> to vector<1x1x1x1xf32>
    %cst_26 = arith.constant dense<0xFF800000> : vector<1x8x128xf32>
    %37 = vector.multi_reduction <maximumf>, %2, %cst_26 [1] : vector<1x8x8x128xf32> to vector<1x8x128xf32>
    %38 = vector.shape_cast %37 : vector<1x8x128xf32> to vector<1x1x8x128xf32>
    %39 = vector.broadcast %38 : vector<1x1x8x128xf32> to vector<1x8x8x128xf32>
    %40 = arith.subf %2, %39 : vector<1x8x8x128xf32>
    %41 = math.exp %40 : vector<1x8x8x128xf32>
    %cst_27 = arith.constant dense<0.000000e+00> : vector<1x8x128xf32>
    %42 = vector.multi_reduction <add>, %41, %cst_27 [1] : vector<1x8x8x128xf32> to vector<1x8x128xf32>
    %43 = vector.shape_cast %42 : vector<1x8x128xf32> to vector<1x1x8x128xf32>
    %44 = math.log %43 : vector<1x1x8x128xf32>
    %45 = arith.addf %44, %38 : vector<1x1x8x128xf32>
    %46 = arith.subf %45, %3 : vector<1x1x8x128xf32>
    %cst_28 = arith.constant dense<true> : vector<1x1x8x128xi1>
    %47 = arith.xori %11, %cst_28 : vector<1x1x8x128xi1>
    %48 = arith.ori %13, %47 : vector<1x1x8x128xi1>
    %cst_29 = arith.constant 0.000000e+00 : f32
    %49 = vector.broadcast %cst_29 : f32 to vector<1x1x8x128xf32>
    %50 = arith.select %48, %49, %46 : vector<1x1x8x128xi1>, vector<1x1x8x128xf32>
    %cst_30 = arith.constant 3.000000e+00 : f32
    %51 = vector.broadcast %cst_30 : f32 to vector<1x1x1x1xf32>
    %52 = arith.mulf %51, %19 : vector<1x1x1x1xf32>
    %cst_31 = arith.constant 1.990000e+02 : f32
    %53 = vector.broadcast %cst_31 : f32 to vector<1x1x1x1xf32>
    %54 = arith.minimumf %52, %53 : vector<1x1x1x1xf32>
    %cst_32 = arith.constant dense<0xFF800000> : vector<1x1x8xf32>
    %55 = vector.multi_reduction <maximumf>, %50, %cst_32 [3] : vector<1x1x8x128xf32> to vector<1x1x8xf32>
    %56 = vector.shape_cast %55 : vector<1x1x8xf32> to vector<1x1x8x1xf32>
    %cst_33 = arith.constant dense<0xFF800000> : vector<1x1x1xf32>
    %57 = vector.multi_reduction <maximumf>, %56, %cst_33 [2] : vector<1x1x8x1xf32> to vector<1x1x1xf32>
    %58 = vector.shape_cast %57 : vector<1x1x1xf32> to vector<1x1x1x1xf32>
    %cst_34 = arith.constant 0.000000e+00 : f32
    %59 = vector.broadcast %cst_34 : f32 to vector<1x1x1x1xf32>
    %c0_i32_35 = arith.constant 0 : i32
    %c10_i32 = arith.constant 10 : i32
    %60 = arith.addi %c0_i32_35, %c10_i32 : i32
    %c1_i32 = arith.constant 1 : i32
    %61:2 = scf.for %arg7 = %c0_i32_35 to %60 step %c1_i32 iter_args(%arg8 = %59, %arg9 = %58) -> (vector<1x1x1x1xf32>, vector<1x1x1x1xf32>)  : i32 {
      %106 = arith.addf %arg8, %arg9 : vector<1x1x1x1xf32>
      %cst_51 = arith.constant 5.000000e-01 : f32
      %107 = vector.broadcast %cst_51 : f32 to vector<1x1x1x1xf32>
      %108 = arith.mulf %107, %106 : vector<1x1x1x1xf32>
      %109 = vector.broadcast %108 : vector<1x1x1x1xf32> to vector<1x1x8x128xf32>
      %110 = arith.cmpf ogt, %50, %109 : vector<1x1x8x128xf32>
      %cst_52 = arith.constant 1.000000e+00 : f32
      %cst_53 = arith.constant 0.000000e+00 : f32
      %111 = vector.broadcast %cst_52 : f32 to vector<1x1x8x128xf32>
      %112 = vector.broadcast %cst_53 : f32 to vector<1x1x8x128xf32>
      %113 = arith.select %110, %111, %112 : vector<1x1x8x128xi1>, vector<1x1x8x128xf32>
      %cst_54 = arith.constant dense<0.000000e+00> : vector<1x1x8xf32>
      %114 = vector.multi_reduction <add>, %113, %cst_54 [3] : vector<1x1x8x128xf32> to vector<1x1x8xf32>
      %115 = vector.shape_cast %114 : vector<1x1x8xf32> to vector<1x1x8x1xf32>
      %cst_55 = arith.constant dense<0.000000e+00> : vector<1x1x1xf32>
      %116 = vector.multi_reduction <add>, %115, %cst_55 [2] : vector<1x1x8x1xf32> to vector<1x1x1xf32>
      %117 = vector.shape_cast %116 : vector<1x1x1xf32> to vector<1x1x1x1xf32>
      %118 = arith.cmpf oge, %117, %54 : vector<1x1x1x1xf32>
      %119 = arith.select %118, %108, %arg8 : vector<1x1x1x1xi1>, vector<1x1x1x1xf32>
      %120 = arith.select %118, %arg9, %108 : vector<1x1x1x1xi1>, vector<1x1x1x1xf32>
      %121 = arith.addf %119, %120 : vector<1x1x1x1xf32>
      %cst_56 = arith.constant 5.000000e-01 : f32
      %122 = vector.broadcast %cst_56 : f32 to vector<1x1x1x1xf32>
      %123 = arith.mulf %122, %121 : vector<1x1x1x1xf32>
      %124 = vector.broadcast %123 : vector<1x1x1x1xf32> to vector<1x1x8x128xf32>
      %125 = arith.cmpf ogt, %50, %124 : vector<1x1x8x128xf32>
      %cst_57 = arith.constant 1.000000e+00 : f32
      %cst_58 = arith.constant 0.000000e+00 : f32
      %126 = vector.broadcast %cst_57 : f32 to vector<1x1x8x128xf32>
      %127 = vector.broadcast %cst_58 : f32 to vector<1x1x8x128xf32>
      %128 = arith.select %125, %126, %127 : vector<1x1x8x128xi1>, vector<1x1x8x128xf32>
      %cst_59 = arith.constant dense<0.000000e+00> : vector<1x1x8xf32>
      %129 = vector.multi_reduction <add>, %128, %cst_59 [3] : vector<1x1x8x128xf32> to vector<1x1x8xf32>
      %130 = vector.shape_cast %129 : vector<1x1x8xf32> to vector<1x1x8x1xf32>
      %cst_60 = arith.constant dense<0.000000e+00> : vector<1x1x1xf32>
      %131 = vector.multi_reduction <add>, %130, %cst_60 [2] : vector<1x1x8x1xf32> to vector<1x1x1xf32>
      %132 = vector.shape_cast %131 : vector<1x1x1xf32> to vector<1x1x1x1xf32>
      %133 = arith.cmpf oge, %132, %54 : vector<1x1x1x1xf32>
      %134 = arith.select %133, %123, %119 : vector<1x1x1x1xi1>, vector<1x1x1x1xf32>
      %135 = arith.select %133, %120, %123 : vector<1x1x1x1xi1>, vector<1x1x1x1xf32>
      scf.yield %134, %135 : vector<1x1x1x1xf32>, vector<1x1x1x1xf32>
    }
    %62 = arith.addf %61#0, %61#1 : vector<1x1x1x1xf32>
    %cst_36 = arith.constant 5.000000e-01 : f32
    %63 = vector.broadcast %cst_36 : f32 to vector<1x1x1x1xf32>
    %64 = arith.mulf %63, %62 : vector<1x1x1x1xf32>
    %65 = vector.broadcast %64 : vector<1x1x1x1xf32> to vector<1x1x8x128xf32>
    %66 = arith.cmpf ogt, %50, %65 : vector<1x1x8x128xf32>
    %67 = arith.extui %66 : vector<1x1x8x128xi1> to vector<1x1x8x128xi32>
    %68 = arith.sitofp %67 : vector<1x1x8x128xi32> to vector<1x1x8x128xf32>
    %cst_37 = arith.constant dense<0.000000e+00> : vector<1x1x8xf32>
    %69 = vector.multi_reduction <add>, %68, %cst_37 [3] : vector<1x1x8x128xf32> to vector<1x1x8xf32>
    %70 = vector.shape_cast %69 : vector<1x1x8xf32> to vector<1x1x8x1xf32>
    %cst_38 = arith.constant dense<0.000000e+00> : vector<1x1x1xf32>
    %71 = vector.multi_reduction <add>, %70, %cst_38 [2] : vector<1x1x8x1xf32> to vector<1x1x1xf32>
    %72 = vector.shape_cast %71 : vector<1x1x1xf32> to vector<1x1x1x1xf32>
    %cst_39 = arith.constant 0.000000e+00 : f32
    %73 = vector.broadcast %cst_39 : f32 to vector<1x1x8x128xf32>
    %74 = arith.select %66, %50, %73 : vector<1x1x8x128xi1>, vector<1x1x8x128xf32>
    %cst_40 = arith.constant dense<0.000000e+00> : vector<1x1x8xf32>
    %75 = vector.multi_reduction <add>, %74, %cst_40 [3] : vector<1x1x8x128xf32> to vector<1x1x8xf32>
    %76 = vector.shape_cast %75 : vector<1x1x8xf32> to vector<1x1x8x1xf32>
    %cst_41 = arith.constant dense<0.000000e+00> : vector<1x1x1xf32>
    %77 = vector.multi_reduction <add>, %76, %cst_41 [2] : vector<1x1x8x1xf32> to vector<1x1x1xf32>
    %78 = vector.shape_cast %77 : vector<1x1x1xf32> to vector<1x1x1x1xf32>
    %79 = arith.subf %54, %72 : vector<1x1x1x1xf32>
    %80 = arith.mulf %64, %79 : vector<1x1x1x1xf32>
    %81 = arith.addf %78, %80 : vector<1x1x1x1xf32>
    %82 = arith.mulf %46, %15 : vector<1x1x8x128xf32>
    %cst_42 = arith.constant dense<0.000000e+00> : vector<1x1x8xf32>
    %83 = vector.multi_reduction <add>, %82, %cst_42 [3] : vector<1x1x8x128xf32> to vector<1x1x8xf32>
    %84 = vector.shape_cast %83 : vector<1x1x8xf32> to vector<1x1x8x1xf32>
    %cst_43 = arith.constant dense<0.000000e+00> : vector<1x1x1xf32>
    %85 = vector.multi_reduction <add>, %84, %cst_43 [2] : vector<1x1x8x1xf32> to vector<1x1x1xf32>
    %86 = vector.shape_cast %85 : vector<1x1x1xf32> to vector<1x1x1x1xf32>
    %87 = arith.addf %86, %81 : vector<1x1x1x1xf32>
    %88 = tpu.iota {dimensions = array<i32: 3>} : vector<1x1x1x128xi32>
    %c0_i32_44 = arith.constant 0 : i32
    %89 = vector.broadcast %c0_i32_44 : i32 to vector<1x1x1x128xi32>
    %90 = arith.cmpi eq, %88, %89 : vector<1x1x1x128xi32>
    %c1_i32_45 = arith.constant 1 : i32
    %91 = vector.broadcast %c1_i32_45 : i32 to vector<1x1x1x128xi32>
    %92 = arith.cmpi eq, %88, %91 : vector<1x1x1x128xi32>
    %c2_i32 = arith.constant 2 : i32
    %93 = vector.broadcast %c2_i32 : i32 to vector<1x1x1x128xi32>
    %94 = arith.cmpi eq, %88, %93 : vector<1x1x1x128xi32>
    %cst_46 = arith.constant 0.000000e+00 : f32
    %95 = vector.shape_cast %19 : vector<1x1x1x1xf32> to vector<1x1x1x1xf32>
    %96 = vector.broadcast %95 : vector<1x1x1x1xf32> to vector<1x1x1x128xf32>
    %97 = vector.broadcast %cst_46 : f32 to vector<1x1x1x128xf32>
    %98 = arith.select %94, %96, %97 : vector<1x1x1x128xi1>, vector<1x1x1x128xf32>
    %99 = vector.shape_cast %87 : vector<1x1x1x1xf32> to vector<1x1x1x1xf32>
    %100 = vector.broadcast %99 : vector<1x1x1x1xf32> to vector<1x1x1x128xf32>
    %101 = arith.select %92, %100, %98 : vector<1x1x1x128xi1>, vector<1x1x1x128xf32>
    %102 = vector.shape_cast %36 : vector<1x1x1x1xf32> to vector<1x1x1x1xf32>
    %103 = vector.broadcast %102 : vector<1x1x1x1xf32> to vector<1x1x1x128xf32>
    %104 = arith.select %90, %103, %101 : vector<1x1x1x128xi1>, vector<1x1x1x128xf32>
    %c0_47 = arith.constant 0 : index
    %c0_48 = arith.constant 0 : index
    %c0_49 = arith.constant 0 : index
    %c0_50 = arith.constant 0 : index
    %105 = vector.load %arg6[%c0_47, %c0_48, %c0_49, %c0_50] : memref<1x1x1x128xf32, #tpu.memory_space<vmem>>, vector<1x1x1x128xf32>
    tpu.vector_store %arg6[%c0_47, %c0_48, %c0_49, %c0_50], %104 {strides = array<i32>} : memref<1x1x1x128xf32, #tpu.memory_space<vmem>>, vector<1x1x1x128xf32>,
    return
  }
  func.func @transform_0(%arg0: i32) -> (i32, i32, i32, i32) {
    %c0_i32 = arith.constant 0 : i32
    %c0_i32_0 = arith.constant 0 : i32
    %c0_i32_1 = arith.constant 0 : i32
    %c0_i32_2 = arith.constant 0 : i32
    return %arg0, %c0_i32, %c0_i32_0, %c0_i32_1 : i32, i32, i32, i32
  }
  func.func @transform_1(%arg0: i32) -> (i32, i32, i32, i32) {
    %c0_i32 = arith.constant 0 : i32
    %c0_i32_0 = arith.constant 0 : i32
    %c0_i32_1 = arith.constant 0 : i32
    %c0_i32_2 = arith.constant 0 : i32
    return %arg0, %c0_i32, %c0_i32_0, %c0_i32_1 : i32, i32, i32, i32
  }
  func.func @transform_2(%arg0: i32) -> (i32, i32, i32, i32) {
    %c0_i32 = arith.constant 0 : i32
    %c0_i32_0 = arith.constant 0 : i32
    %c0_i32_1 = arith.constant 0 : i32
    %c0_i32_2 = arith.constant 0 : i32
    return %arg0, %c0_i32, %c0_i32_0, %c0_i32_1 : i32, i32, i32, i32
  }
  func.func @transform_3(%arg0: i32) -> (i32, i32, i32, i32) {
    %c0_i32 = arith.constant 0 : i32
    %c0_i32_0 = arith.constant 0 : i32
    %c0_i32_1 = arith.constant 0 : i32
    %c0_i32_2 = arith.constant 0 : i32
    return %arg0, %c0_i32, %c0_i32_0, %c0_i32_1 : i32, i32, i32, i32
  }
  func.func @transform_4(%arg0: i32) -> (i32, i32, i32, i32) {
    %c0_i32 = arith.constant 0 : i32
    %c0_i32_0 = arith.constant 0 : i32
    %c0_i32_1 = arith.constant 0 : i32
    %c0_i32_2 = arith.constant 0 : i32
    return %arg0, %c0_i32, %c0_i32_0, %c0_i32_1 : i32, i32, i32, i32
  }
  func.func @transform_5(%arg0: i32) -> (i32, i32, i32, i32) {
    %c0_i32 = arith.constant 0 : i32
    %c0_i32_0 = arith.constant 0 : i32
    %c0_i32_1 = arith.constant 0 : i32
    %c0_i32_2 = arith.constant 0 : i32
    return %arg0, %c0_i32, %c0_i32_0, %c0_i32_1 : i32, i32, i32, i32
  }
}

</mosaic_0001>

<llo_original>
// kernel: multibox_loss.1
$region0: #{multibox_loss.1}
  #allocation0 [shape = 'u32[]', space=smem, size = 0x4, offset = 0x4, fixed_abs, tag = 'smem constant byte address 0x4 - core index']
  #allocation1 [shape = 'u32[144,128]{1,0:T(1,128)}', space=vmem, size = 0x12000, scoped, tag = 'internal scratch']
  %s0 = inlined_call_operand.vmem [shape: f32[2,4,8,128], index: 0, kind: input, shape index: {}]
  %s1 = inlined_call_operand.vmem [shape: f32[2,4,8,128], index: 1, kind: input, shape index: {}]
  %s2 = inlined_call_operand.vmem [shape: f32[2,8,8,128], index: 2, kind: input, shape index: {}]
  %s3 = inlined_call_operand.vmem [shape: f32[2,1,8,128], index: 3, kind: input, shape index: {}]
  %s4 = inlined_call_operand.vmem [shape: s32[2,1,8,128], index: 4, kind: input, shape index: {}]
  %s5 = inlined_call_operand.vmem [shape: f32[2,1,1,128], index: 5, kind: output, shape index: {}]
  %s6 = sld [smem:[#allocation0]]
  $region60: #{multibox_loss.1} parent=0
    _
  %s8 = ssub.s32 1, %s6
  %s9 = scalar_select 0, %s8, %s6
  loop: start=0, step=1, limit=4
  $region2: #{multibox_loss.1} parent=0 // loop_pre_header
    _
  $region3: #{multibox_loss.1} parent=0 // loop_header
    %s11 = sphi 0, %s15
    %p12 = scmp.ge.s32.totalorder %s11, 4
    %s21 = sphi 0, %s23
    %s24 = sphi 0, %s21
    %s25 = sphi 0, %s24
    %s41 = sphi 0, %s25
    %s47 = sphi 0, %s49
    %s50 = sphi 0, %s47
    %s51 = sphi 0, %s50
    %s67 = sphi 0, %s51
    %s73 = sphi 0, %s75
    %s76 = sphi 0, %s73
    %s77 = sphi 0, %s76
    %s93 = sphi 0, %s77
    %s99 = sphi 0, %s101
    %s102 = sphi 0, %s99
    %s103 = sphi 0, %s102
    %s119 = sphi 0, %s103
    %s125 = sphi 0, %s127
    %s128 = sphi 0, %s125
    %s129 = sphi 0, %s128
    %s145 = sphi 0, %s129
    %s151 = sphi 0, %s153
    %s154 = sphi 0, %s151
    %s155 = sphi 0, %s154
    %s171 = sphi 0, %s155
  $region4: #{multibox_loss.1} parent=0 // loop_header_branch
    %14 = sbr.rel (%p12) target = $region8
  $region5: #{multibox_loss.1} parent=0 // loop_body
    %s16 = ssub.s32 %s11, 1
    %s17 = ssub.s32 %s11, 2
    %s18 = sadd.s32 %s11, 1
    %s19 = ssub.s32 %s11, %s18
    %p20 = scmp.eq.s32.totalorder %s19, 0
    %s22 = sadd.s32 %s21, 1
    %s23 = scalar_select %p20, %s21, %s22
    %p26 = pneg %p20
    %p27 = scmp.eq.s32.totalorder %s11, 1
    %p28 = por %p26, %p27
    %p29 = scmp.ne.s32.totalorder %s21, %s24
    %p30 = scmp.eq.s32.totalorder %s11, 0
    %p31 = por %p29, %p30
    %p32 = scmp.ne.s32.totalorder %s21, %s24
    %p33 = scmp.eq.s32.totalorder %s16, 1
    %p34 = por %p32, %p33
    %p35 = scmp.ne.s32.totalorder %s24, %s25
    %p36 = scmp.eq.s32.totalorder %s16, 0
    %p37 = por %p35, %p36
    %p38 = scmp.ne.s32.totalorder %s24, %s25
    %p39 = scmp.eq.s32.totalorder %s17, 1
    %p40 = por %p38, %p39
    %p42 = scmp.ne.s32.totalorder %s25, %s41
    %p43 = scmp.eq.s32.totalorder %s17, 0
    %p44 = por %p42, %p43
    %s45 = ssub.s32 %s11, %s18
    %p46 = scmp.eq.s32.totalorder %s45, 0
    %s48 = sadd.s32 %s47, 1
    %s49 = scalar_select %p46, %s47, %s48
    %p52 = pneg %p46
    %p53 = scmp.eq.s32.totalorder %s11, 1
    %p54 = por %p52, %p53
    %p55 = scmp.ne.s32.totalorder %s47, %s50
    %p56 = scmp.eq.s32.totalorder %s11, 0
    %p57 = por %p55, %p56
    %p58 = scmp.ne.s32.totalorder %s47, %s50
    %p59 = scmp.eq.s32.totalorder %s16, 1
    %p60 = por %p58, %p59
    %p61 = scmp.ne.s32.totalorder %s50, %s51
    %p62 = scmp.eq.s32.totalorder %s16, 0
    %p63 = por %p61, %p62
    %p64 = scmp.ne.s32.totalorder %s50, %s51
    %p65 = scmp.eq.s32.totalorder %s17, 1
    %p66 = por %p64, %p65
    %p68 = scmp.ne.s32.totalorder %s51, %s67
    %p69 = scmp.eq.s32.totalorder %s17, 0
    %p70 = por %p68, %p69
    %s71 = ssub.s32 %s11, %s18
    %p72 = scmp.eq.s32.totalorder %s71, 0
    %s74 = sadd.s32 %s73, 1
    %s75 = scalar_select %p72, %s73, %s74
    %p78 = pneg %p72
    %p79 = scmp.eq.s32.totalorder %s11, 1
    %p80 = por %p78, %p79
    %p81 = scmp.ne.s32.totalorder %s73, %s76
    %p82 = scmp.eq.s32.totalorder %s11, 0
    %p83 = por %p81, %p82
    %p84 = scmp.ne.s32.totalorder %s73, %s76
    %p85 = scmp.eq.s32.totalorder %s16, 1
    %p86 = por %p84, %p85
    %p87 = scmp.ne.s32.totalorder %s76, %s77
    %p88 = scmp.eq.s32.totalorder %s16, 0
    %p89 = por %p87, %p88
    %p90 = scmp.ne.s32.totalorder %s76, %s77
    %p91 = scmp.eq.s32.totalorder %s17, 1
    %p92 = por %p90, %p91
    %p94 = scmp.ne.s32.totalorder %s77, %s93
    %p95 = scmp.eq.s32.totalorder %s17, 0
    %p96 = por %p94, %p95
    %s97 = ssub.s32 %s11, %s18
    %p98 = scmp.eq.s32.totalorder %s97, 0
    %s100 = sadd.s32 %s99, 1
    %s101 = scalar_select %p98, %s99, %s100
    %p104 = pneg %p98
    %p105 = scmp.eq.s32.totalorder %s11, 1
    %p106 = por %p104, %p105
    %p107 = scmp.ne.s32.totalorder %s99, %s102
    %p108 = scmp.eq.s32.totalorder %s11, 0
    %p109 = por %p107, %p108
    %p110 = scmp.ne.s32.totalorder %s99, %s102
    %p111 = scmp.eq.s32.totalorder %s16, 1
    %p112 = por %p110, %p111
    %p113 = scmp.ne.s32.totalorder %s102, %s103
    %p114 = scmp.eq.s32.totalorder %s16, 0
    %p115 = por %p113, %p114
    %p116 = scmp.ne.s32.totalorder %s102, %s103
    %p117 = scmp.eq.s32.totalorder %s17, 1
    %p118 = por %p116, %p117
    %p120 = scmp.ne.s32.totalorder %s103, %s119
    %p121 = scmp.eq.s32.totalorder %s17, 0
    %p122 = por %p120, %p121
    %s123 = ssub.s32 %s11, %s18
    %p124 = scmp.eq.s32.totalorder %s123, 0
    %s126 = sadd.s32 %s125, 1
    %s127 = scalar_select %p124, %s125, %s126
    %p130 = pneg %p124
    %p131 = scmp.eq.s32.totalorder %s11, 1
    %p132 = por %p130, %p131
    %p133 = scmp.ne.s32.totalorder %s125, %s128
    %p134 = scmp.eq.s32.totalorder %s11, 0
    %p135 = por %p133, %p134
    %p136 = scmp.ne.s32.totalorder %s125, %s128
    %p137 = scmp.eq.s32.totalorder %s16, 1
    %p138 = por %p136, %p137
    %p139 = scmp.ne.s32.totalorder %s128, %s129
    %p140 = scmp.eq.s32.totalorder %s16, 0
    %p141 = por %p139, %p140
    %p142 = scmp.ne.s32.totalorder %s128, %s129
    %p143 = scmp.eq.s32.totalorder %s17, 1
    %p144 = por %p142, %p143
    %p146 = scmp.ne.s32.totalorder %s129, %s145
    %p147 = scmp.eq.s32.totalorder %s17, 0
    %p148 = por %p146, %p147
    %s149 = ssub.s32 %s11, %s18
    %p150 = scmp.eq.s32.totalorder %s149, 0
    %s152 = sadd.s32 %s151, 1
    %s153 = scalar_select %p150, %s151, %s152
    %p156 = pneg %p150
    %p157 = scmp.eq.s32.totalorder %s11, 1
    %p158 = por %p156, %p157
    %p159 = scmp.ne.s32.totalorder %s151, %s154
    %p160 = scmp.eq.s32.totalorder %s11, 0
    %p161 = por %p159, %p160
    %p162 = scmp.ne.s32.totalorder %s151, %s154
    %p163 = scmp.eq.s32.totalorder %s16, 1
    %p164 = por %p162, %p163
    %p165 = scmp.ne.s32.totalorder %s154, %s155
    %p166 = scmp.eq.s32.totalorder %s16, 0
    %p167 = por %p165, %p166
    %p168 = scmp.ne.s32.totalorder %s154, %s155
    %p169 = scmp.eq.s32.totalorder %s17, 1
    %p170 = por %p168, %p169
    %p172 = scmp.ne.s32.totalorder %s155, %s171
    %p173 = scmp.eq.s32.totalorder %s17, 0
    %p174 = por %p172, %p173
    %p175 = scmp.le.s32.totalorder 1, %s11
    %p176 = scmp.lt.s32.totalorder %s11, 3
    %p177 = pnand %p175, %p176
    %p178 = pneg %p177
    // Predicated region
    $region9: #{multibox_loss.1} parent=5 // pred_check
      _
    $region10: #{multibox_loss.1} parent=5 // pred_check_branch
      %180 = sbr.rel (%p177) target = $region12
    $region11: #{multibox_loss.1} parent=5 // pred_region
      %s181 = ssub.s32 %s11, 1
    $region12: #{multibox_loss.1} parent=5 // pred_fallthru
      _
    %p182 = scmp.lt.s32.totalorder %s11, 2
    // Predicated region
    $region13: #{multibox_loss.1} parent=5 // pred_check
      %p183 = pneg %p182
    $region14: #{multibox_loss.1} parent=5 // pred_check_branch
      %185 = sbr.rel (%p183) target = $region16
    $region15: #{multibox_loss.1} parent=5 // pred_region
      // Predicated region
      $region17: #{multibox_loss.1} parent=15 // pred_check
        %p186 = pneg %p31
      $region18: #{multibox_loss.1} parent=15 // pred_check_branch
        %188 = sbr.rel (%p186) target = $region20
      $region19: #{multibox_loss.1} parent=15 // pred_region
        %p189 = scmp.lt.s32.totalorder %s11, 1
        %s190 = scalar_select %p189, %s11, 1
        %s191 = smul.addr %s190, 4
        %s192 = smul.addr %s191, 8
        %s193 = scalar_lea.vmem %s0, %s192
      $region20: #{multibox_loss.1} parent=15 // pred_fallthru
        _
      // Predicated region
      $region21: #{multibox_loss.1} parent=15 // pred_check
        %p194 = pneg %p57
      $region22: #{multibox_loss.1} parent=15 // pred_check_branch
        %196 = sbr.rel (%p194) target = $region24
      $region23: #{multibox_loss.1} parent=15 // pred_region
        %p197 = scmp.lt.s32.totalorder %s11, 1
        %s198 = scalar_select %p197, %s11, 1
        %s199 = smul.addr %s198, 4
        %s200 = smul.addr %s199, 8
        %s201 = scalar_lea.vmem %s1, %s200
      $region24: #{multibox_loss.1} parent=15 // pred_fallthru
        _
      // Predicated region
      $region25: #{multibox_loss.1} parent=15 // pred_check
        %p202 = pneg %p83
      $region26: #{multibox_loss.1} parent=15 // pred_check_branch
        %204 = sbr.rel (%p202) target = $region28
      $region27: #{multibox_loss.1} parent=15 // pred_region
        %p205 = scmp.lt.s32.totalorder %s11, 1
        %s206 = scalar_select %p205, %s11, 1
        %s207 = smul.addr %s206, 8
        %s208 = smul.addr %s207, 8
        %s209 = scalar_lea.vmem %s2, %s208
      $region28: #{multibox_loss.1} parent=15 // pred_fallthru
        _
      // Predicated region
      $region29: #{multibox_loss.1} parent=15 // pred_check
        %p210 = pneg %p109
      $region30: #{multibox_loss.1} parent=15 // pred_check_branch
        %212 = sbr.rel (%p210) target = $region32
      $region31: #{multibox_loss.1} parent=15 // pred_region
        %p213 = scmp.lt.s32.totalorder %s11, 1
        %s214 = scalar_select %p213, %s11, 1
        %s215 = smul.addr %s214, 8
        %s216 = scalar_lea.vmem %s3, %s215
      $region32: #{multibox_loss.1} parent=15 // pred_fallthru
        _
      // Predicated region
      $region33: #{multibox_loss.1} parent=15 // pred_check
        %p217 = pneg %p135
      $region34: #{multibox_loss.1} parent=15 // pred_check_branch
        %219 = sbr.rel (%p217) target = $region36
      $region35: #{multibox_loss.1} parent=15 // pred_region
        %p220 = scmp.lt.s32.totalorder %s11, 1
        %s221 = scalar_select %p220, %s11, 1
        %s222 = smul.addr %s221, 8
        %s223 = scalar_lea.vmem %s4, %s222
      $region36: #{multibox_loss.1} parent=15 // pred_fallthru
        _
    $region16: #{multibox_loss.1} parent=5 // pred_fallthru
      _
    %p224 = scmp.le.s32.totalorder 1, %s11
    %p225 = scmp.lt.s32.totalorder %s11, 3
    %p226 = pnand %p224, %p225
    %p227 = pneg %p226
    // Predicated region
    $region37: #{multibox_loss.1} parent=5 // pred_check
      _
    $region38: #{multibox_loss.1} parent=5 // pred_check_branch
      %229 = sbr.rel (%p226) target = $region40
    $region39: #{multibox_loss.1} parent=5 // pred_region
      %s230 = ssub.s32 %s11, 1
      %p231 = scmp.lt.s32.totalorder %s16, 1
      %s232 = scalar_select %p231, %s16, 1
      %s233 = smul.addr %s232, 4
      %s234 = smul.addr %s233, 8
      %s235 = scalar_lea.vmem %s0, %s234
      %p236 = pneg %p37
      %p237 = pneg %p34
      %p238 = scmp.lt.s32.totalorder %s16, 1
      %s239 = scalar_select %p238, %s16, 1
      %s240 = smul.addr %s239, 4
      %s241 = smul.addr %s240, 8
      %s242 = scalar_lea.vmem %s1, %s241
      %p243 = pneg %p63
      %p244 = pneg %p60
      %p245 = scmp.lt.s32.totalorder %s16, 1
      %s246 = scalar_select %p245, %s16, 1
      %s247 = smul.addr %s246, 8
      %s248 = smul.addr %s247, 8
      %s249 = scalar_lea.vmem %s2, %s248
      %p250 = pneg %p89
      %p251 = pneg %p86
      %p252 = scmp.lt.s32.totalorder %s16, 1
      %s253 = scalar_select %p252, %s16, 1
      %s254 = smul.addr %s253, 8
      %s255 = scalar_lea.vmem %s3, %s254
      %p256 = pneg %p115
      %p257 = pneg %p112
      %p258 = scmp.lt.s32.totalorder %s16, 1
      %s259 = scalar_select %p258, %s16, 1
      %s260 = smul.addr %s259, 8
      %s261 = scalar_lea.vmem %s4, %s260
      %p262 = pneg %p141
      %p263 = pneg %p138
      %p264 = pneg %p167
      %p265 = pneg %p164
      %p266 = scmp.lt.s32.totalorder %s16, 1
      %s267 = scalar_select %p266, %s16, 1
      %s268 = scalar_lea.vmem %s5, %s267
      %p269 = scmp.lt.s32.totalorder %s16, 1
      %s270 = scalar_select %p269, %s16, 1
      %s271 = smul.addr %s270, 4
      %s272 = smul.addr %s271, 8
      %s273 = scalar_lea.vmem %s0, %s272
      %p274 = scmp.lt.s32.totalorder %s16, 1
      %s275 = scalar_select %p274, %s16, 1
      %s276 = smul.addr %s275, 4
      %s277 = smul.addr %s276, 8
      %s278 = scalar_lea.vmem %s1, %s277
      %p279 = scmp.lt.s32.totalorder %s16, 1
      %s280 = scalar_select %p279, %s16, 1
      %s281 = smul.addr %s280, 8
      %s282 = smul.addr %s281, 8
      %s283 = scalar_lea.vmem %s2, %s282
      %p284 = scmp.lt.s32.totalorder %s16, 1
      %s285 = scalar_select %p284, %s16, 1
      %s286 = smul.addr %s285, 8
      %s287 = scalar_lea.vmem %s3, %s286
      %p288 = scmp.lt.s32.totalorder %s16, 1
      %s289 = scalar_select %p288, %s16, 1
      %s290 = smul.addr %s289, 8
      %s291 = scalar_lea.vmem %s4, %s290
      %p292 = scmp.lt.s32.totalorder %s16, 1
      %s293 = scalar_select %p292, %s16, 1
      %s294 = scalar_lea.vmem %s5, %s293
      %v295 = vld [vmem:[%s273] sm:$0xff]
      %v296 = vld [vmem:[%s273 + $0x8] sm:$0xff]
      %v297 = vld [vmem:[%s273 + $0x10] sm:$0xff]
      %v298 = vld [vmem:[%s273 + $0x18] sm:$0xff]
      %v299 = vld [vmem:[%s278] sm:$0xff]
      %v300 = vld [vmem:[%s278 + $0x8] sm:$0xff]
      %v301 = vld [vmem:[%s278 + $0x10] sm:$0xff]
      %v302 = vld [vmem:[%s278 + $0x18] sm:$0xff]
      %v303 = vld [vmem:[%s283] sm:$0xff]
      %v304 = vld [vmem:[%s283 + $0x8] sm:$0xff]
      %v305 = vld [vmem:[%s283 + $0x10] sm:$0xff]
      %v306 = vld [vmem:[%s283 + $0x18] sm:$0xff]
      %v307 = vld [vmem:[%s283 + $0x20] sm:$0xff]
      %v308 = vld [vmem:[%s283 + $0x28] sm:$0xff]
      %v309 = vld [vmem:[%s283 + $0x30] sm:$0xff]
      %v310 = vld [vmem:[%s283 + $0x38] sm:$0xff]
      %v311 = vld [vmem:[%s287] sm:$0xff]
      %v312 = vld [vmem:[%s291] sm:$0xff]
      %v313 = vlaneseq
      %v314 = vshrl.u32 %v313, 7
      %v315 = vlaneseq
      %v316 = vand.u32 %v315, 127
      %v317 = vmul.u32 %v314, 128
      %v318 = vadd.s32 %v317, %v316
      %vm319 = vcmp.lt.s32.totalorder %v318, 200
      %vm320 = vcmp.gt.s32.totalorder %v312, 0
      %v321 = vsel %vm320, 1, 0
      %v322 = vcvt.s32.f32 %v321
      %323 = vadd.xlane.f32.xlu0 %v322
      %v324 = vpop.xlane.xlu0 %323
      %v325 = vrot.slane %v324, 4
      %v326 = vadd.f32 %v324, %v325
      %v327 = vrot.slane %v326, 2
      %v328 = vadd.f32 %v326, %v327
      %v329 = vrot.slane %v328, 1
      %v330 = vadd.f32 %v328, %v329
      %v331 = vsub.f32 %v295, %v299
      %v332 = vsub.f32 %v296, %v300
      %v333 = vsub.f32 %v297, %v301
      %v334 = vsub.f32 %v298, %v302
      %v335 = vand.u32 2147483647, %v331
      %v336 = vand.u32 2147483647, %v332
      %v337 = vand.u32 2147483647, %v333
      %v338 = vand.u32 2147483647, %v334
      %vm339 = vcmp.lt.f32.partialorder %v335, 1.0
      %vm340 = vcmp.lt.f32.partialorder %v336, 1.0
      %vm341 = vcmp.lt.f32.partialorder %v337, 1.0
      %vm342 = vcmp.lt.f32.partialorder %v338, 1.0
      %v343 = vmul.f32 %v331, 0.5
      %v344 = vmul.f32 %v332, 0.5
      %v345 = vmul.f32 %v333, 0.5
      %v346 = vmul.f32 %v334, 0.5
      %v347 = vmul.f32 %v343, %v331
      %v348 = vmul.f32 %v344, %v332
      %v349 = vmul.f32 %v345, %v333
      %v350 = vmul.f32 %v346, %v334
      %v351 = vsub.f32 %v335, 0.5
      %v352 = vsub.f32 %v336, 0.5
      %v353 = vsub.f32 %v337, 0.5
      %v354 = vsub.f32 %v338, 0.5
      %v355 = vsel %vm339, %v347, %v351
      %v356 = vsel %vm340, %v348, %v352
      %v357 = vsel %vm341, %v349, %v353
      %v358 = vsel %vm342, %v350, %v354
      %v359 = vadd.f32 %v355, %v356
      %v360 = vadd.f32 %v359, %v357
      %v361 = vadd.f32 %v360, %v358
      %v362 = vmul.f32 %v361, %v322
      %363 = vadd.xlane.f32.xlu0 %v362
      %v364 = vpop.xlane.xlu0 %363
      %v365 = vrot.slane %v364, 4
      %v366 = vadd.f32 %v364, %v365
      %v367 = vrot.slane %v366, 2
      %v368 = vadd.f32 %v366, %v367
      %v369 = vrot.slane %v368, 1
      %v370 = vadd.f32 %v368, %v369
      %v371 = vmax.f32 %v303, %v307
      %v372 = vmax.f32 %v304, %v308
      %v373 = vmax.f32 %v305, %v309
      %v374 = vmax.f32 %v306, %v310
      %v375 = vmax.f32 %v371, %v372
      %v376 = vmax.f32 %v373, %v374
      %v377 = vmax.f32 %v375, %v376
      %v378 = vsub.f32 %v303, %v377
      %v379 = vsub.f32 %v304, %v377
      %v380 = vsub.f32 %v305, %v377
      %v381 = vsub.f32 %v306, %v377
      %v382 = vsub.f32 %v307, %v377
      %v383 = vsub.f32 %v308, %v377
      %v384 = vsub.f32 %v309, %v377
      %v385 = vsub.f32 %v310, %v377
      %v386 = vmul.f32 %v378, 1.442695
      %v387 = vpow.pop %v386
      %v388 = vmul.f32 %v379, 1.442695
      %v389 = vpow.pop %v388
      %v390 = vmul.f32 %v380, 1.442695
      %v391 = vpow.pop %v390
      %v392 = vmul.f32 %v381, 1.442695
      %v393 = vpow.pop %v392
      %v394 = vmul.f32 %v382, 1.442695
      %v395 = vpow.pop %v394
      %v396 = vmul.f32 %v383, 1.442695
      %v397 = vpow.pop %v396
      %v398 = vmul.f32 %v384, 1.442695
      %v399 = vpow.pop %v398
      %v400 = vmul.f32 %v385, 1.442695
      %v401 = vpow.pop %v400
      %v402 = vadd.f32 %v387, %v389
      %v403 = vadd.f32 %v402, %v391
      %v404 = vadd.f32 %v403, %v393
      %v405 = vadd.f32 %v404, %v395
      %v406 = vadd.f32 %v405, %v397
      %v407 = vadd.f32 %v406, %v399
      %v408 = vadd.f32 %v407, %v401
      %v409 = vlog2.pop %v408
      %v410 = vmul.f32 %v409, 0.6931472
      %v411 = vadd.f32 %v410, %v377
      %v412 = vsub.f32 %v411, %v311
      %vm413 = vmxor %vm319, 1
      %vm414 = vmor %vm320, %vm413
      %v415 = vsel %vm414, 0.0, %v412
      %v416 = vmul.f32 %v330, 3.0
      %v417 = vmin.f32 %v416, 199.0
      %418 = vmax.xlane.f32.xlu0 %v415
      %v419 = vpop.xlane.xlu0 %418
      %v420 = vrot.slane %v419, 4
      %v421 = vmax.f32 %v419, %v420
      %v422 = vrot.slane %v421, 2
      %v423 = vmax.f32 %v421, %v422
      %v424 = vrot.slane %v423, 1
      %v425 = vmax.f32 %v423, %v424
      loop: start=0, step=1, limit=10
      $region41: #{multibox_loss.1} parent=39 // loop_pre_header
        _
      $region42: #{multibox_loss.1} parent=39 // loop_header
        %s427 = sphi 0, %s431
        %p428 = scmp.ge.s32.totalorder %s427, 10
        %v432 = vphi 0.0, %v462
        %v433 = vphi %v425, %v463
      $region43: #{multibox_loss.1} parent=39 // loop_header_branch
        %430 = sbr.rel (%p428) target = $region47
      $region44: #{multibox_loss.1} parent=39 // loop_body
        %v434 = vadd.f32 %v432, %v433
        %v435 = vmul.f32 %v434, 0.5
        %vm436 = vcmp.gt.f32.partialorder %v415, %v435
        %v437 = vsel %vm436, 1.0, 0.0
        %438 = vadd.xlane.f32.xlu0 %v437
        %v439 = vpop.xlane.xlu0 %438
        %v440 = vrot.slane %v439, 4
        %v441 = vadd.f32 %v439, %v440
        %v442 = vrot.slane %v441, 2
        %v443 = vadd.f32 %v441, %v442
        %v444 = vrot.slane %v443, 1
        %v445 = vadd.f32 %v443, %v444
        %vm446 = vcmp.ge.f32.partialorder %v445, %v417
        %v447 = vsel %vm446, %v435, %v432
        %v448 = vsel %vm446, %v433, %v435
        %v449 = vadd.f32 %v447, %v448
        %v450 = vmul.f32 %v449, 0.5
        %vm451 = vcmp.gt.f32.partialorder %v415, %v450
        %v452 = vsel %vm451, 1.0, 0.0
        %453 = vadd.xlane.f32.xlu0 %v452
        %v454 = vpop.xlane.xlu0 %453
        %v455 = vrot.slane %v454, 4
        %v456 = vadd.f32 %v454, %v455
        %v457 = vrot.slane %v456, 2
        %v458 = vadd.f32 %v456, %v457
        %v459 = vrot.slane %v458, 1
        %v460 = vadd.f32 %v458, %v459
        %vm461 = vcmp.ge.f32.partialorder %v460, %v417
        %v462 = vsel %vm461, %v450, %v447
        %v463 = vsel %vm461, %v448, %v450
      $region45: #{multibox_loss.1} parent=39 // loop_footer
        %s431 = sadd.s32 1, %s427
      $region46: #{multibox_loss.1} parent=39 // loop_footer_branch
        %426 = sbr.rel target = $region42
      $region47: #{multibox_loss.1} parent=39 // loop_exit
        _
      %v464 = vadd.f32 %v432, %v433
      %v465 = vmul.f32 %v464, 0.5
      %vm466 = vcmp.gt.f32.partialorder %v415, %v465
      %v467 = vsel %vm466, 1, 0
      %v468 = vcvt.s32.f32 %v467
      %469 = vadd.xlane.f32.xlu0 %v468
      %v470 = vpop.xlane.xlu0 %469
      %v471 = vrot.slane %v470, 4
      %v472 = vadd.f32 %v470, %v471
      %v473 = vrot.slane %v472, 2
      %v474 = vadd.f32 %v472, %v473
      %v475 = vrot.slane %v474, 1
      %v476 = vadd.f32 %v474, %v475
      %v477 = vsel %vm466, %v415, 0.0
      %478 = vadd.xlane.f32.xlu0 %v477
      %v479 = vpop.xlane.xlu0 %478
      %v480 = vrot.slane %v479, 4
      %v481 = vadd.f32 %v479, %v480
      %v482 = vrot.slane %v481, 2
      %v483 = vadd.f32 %v481, %v482
      %v484 = vrot.slane %v483, 1
      %v485 = vadd.f32 %v483, %v484
      %v486 = vsub.f32 %v417, %v476
      %v487 = vmul.f32 %v465, %v486
      %v488 = vadd.f32 %v485, %v487
      %v489 = vmul.f32 %v412, %v322
      %490 = vadd.xlane.f32.xlu0 %v489
      %v491 = vpop.xlane.xlu0 %490
      %v492 = vrot.slane %v491, 4
      %v493 = vadd.f32 %v491, %v492
      %v494 = vrot.slane %v493, 2
      %v495 = vadd.f32 %v493, %v494
      %v496 = vrot.slane %v495, 1
      %v497 = vadd.f32 %v495, %v496
      %v498 = vadd.f32 %v497, %v488
      %vm499 = vcmp.eq.s32.totalorder %v316, 0
      %vm500 = vcmp.eq.s32.totalorder %v316, 1
      %vm501 = vcmp.eq.s32.totalorder %v316, 2
      %v502 = vsel %vm501, %v330, 0.0
      %v503 = vsel %vm500, %v498, %v502
      %v504 = vsel %vm499, %v370, %v503
      %505 = vst [vmem:[%s294] sm:$0x1] %v504
      %p506 = scmp.lt.s32.totalorder %s16, 1
      %s507 = scalar_select %p506, %s16, 1
      %s508 = scalar_lea.vmem %s5, %s507
      // Predicated region
      $region48: #{multibox_loss.1} parent=39 // pred_check
        %p509 = pneg %p164
      $region49: #{multibox_loss.1} parent=39 // pred_check_branch
        %511 = sbr.rel (%p509) target = $region51
      $region50: #{multibox_loss.1} parent=39 // pred_region
        _
      $region51: #{multibox_loss.1} parent=39 // pred_fallthru
        _
    $region40: #{multibox_loss.1} parent=5 // pred_fallthru
      _
    %p512 = scmp.le.s32.totalorder 2, %s11
    // Predicated region
    $region52: #{multibox_loss.1} parent=5 // pred_check
      %p513 = pneg %p512
    $region53: #{multibox_loss.1} parent=5 // pred_check_branch
      %515 = sbr.rel (%p513) target = $region55
    $region54: #{multibox_loss.1} parent=5 // pred_region
      %s516 = ssub.s32 %s11, 2
      // Predicated region
      $region56: #{multibox_loss.1} parent=54 // pred_check
        %p517 = pneg %p170
      $region57: #{multibox_loss.1} parent=54 // pred_check_branch
        %519 = sbr.rel (%p517) target = $region59
      $region58: #{multibox_loss.1} parent=54 // pred_region
        %p520 = scmp.lt.s32.totalorder %s17, 1
        %s521 = scalar_select %p520, %s17, 1
        %s522 = scalar_lea.vmem %s5, %s521
      $region59: #{multibox_loss.1} parent=54 // pred_fallthru
        _
    $region55: #{multibox_loss.1} parent=5 // pred_fallthru
      _
  $region6: #{multibox_loss.1} parent=0 // loop_footer
    %s15 = sadd.s32 1, %s11
  $region7: #{multibox_loss.1} parent=0 // loop_footer_branch
    %10 = sbr.rel target = $region3
  $region8: #{multibox_loss.1} parent=0 // loop_exit
    _

</llo_original>
